<compile_context>
chip_gen: v5e
topology: v5e:2x2
jax: 0.10.0
libtpu: 0.0.40
codegen_flags: <defaults>
</compile_context>

<pallas_src>
import jax
import jax.numpy as jnp
from jax import lax
from jax.experimental import pallas as pl
from jax.experimental.pallas import tpu as pltpu
import numpy as np

EPS = 1e-8  # module-level EPS referenced (but not shown) in the PyTorch source


# ----------------------------------------------------------------------------
# Pallas kernels
# ----------------------------------------------------------------------------

def _iso_matmul_fused_kernel(w_ref, lmask_ref, a_ref, b_ref, out_ref):
    """out[b] = LMask * (Y_B[:, b] @ Y_A[:, b]^T),  Y_X = W @ X_all.

    w_ref     : (K, S)        = Phi_sorted^T diag(M)   (lane-dense on S)
    lmask_ref : (K, K)
    a_ref/b_ref: (S, batch*C) = batch folded into the matmul N dimension
    out_ref   : (batch, K, K)
    """
    w = w_ref[...]                       # (K, S)
    lmask = lmask_ref[...]               # (K, K) f32
    nb = out_ref.shape[0]
    c = a_ref.shape[1] // nb

    # Single lane-dense MXU contraction per operand (no in-kernel transpose).
    ya = jnp.dot(w, a_ref[...], preferred_element_type=jnp.float32)  # (K, batch*C)
    yb = jnp.dot(w, b_ref[...], preferred_element_type=jnp.float32)  # (K, batch*C)

    # Tiny per-batch Grams, statically unrolled (batch is compile-time).
    for bi in range(nb):
        yb_b = yb[:, bi * c:(bi + 1) * c]          # (K, C)
        ya_b = ya[:, bi * c:(bi + 1) * c]          # (K, C)
        gram = lax.dot_general(                    # contract C dims, no .T
            yb_b, ya_b,
            dimension_numbers=(((1,), (1,)), ((), ())),
            preferred_element_type=jnp.float32)    # (K, K)
        out_ref[bi] = lmask * gram


def iso_matmul_fused(W, LMask, A2, B2, *, batch, compute_dtype=jnp.float32):
    """C[b] = LMask * ((W @ B2)[:, b*C:(b+1)*C] @ (W @ A2)[:, b*C:(b+1)*C]^T)."""
    K, S = W.shape
    N = A2.shape[1]
    return pl.pallas_call(
        _iso_matmul_fused_kernel,
        out_shape=jax.ShapeDtypeStruct((batch, K, K), jnp.float32),
        grid=(1,),
        in_specs=[
            pl.BlockSpec((K, S), lambda i: (0, 0)),
            pl.BlockSpec((K, K), lambda i: (0, 0)),
            pl.BlockSpec((S, N), lambda i: (0, 0)),
            pl.BlockSpec((S, N), lambda i: (0, 0)),
        ],
        out_specs=pl.BlockSpec((batch, K, K), lambda i: (0, 0, 0)),
        compiler_params=pltpu.CompilerParams(dimension_semantics=("arbitrary",)),
    )(W.astype(compute_dtype), LMask.astype(jnp.float32),
      A2.astype(compute_dtype), B2.astype(compute_dtype))


def _batched_matmul_kernel(u_ref, vh_ref, out_ref):
    """out[b] = U_b @ VH_b (whole batch in one grid step; statically unrolled)."""
    nb = out_ref.shape[0]
    for bi in range(nb):
        out_ref[bi] = jnp.dot(u_ref[bi], vh_ref[bi],
                              preferred_element_type=jnp.float32)


def special_ortho_apply(U, VH_adj):
    """tauOmega = U @ VH_adj; sign fix-up already folded into VH_adj's last row."""
    batch, K, _ = U.shape
    return pl.pallas_call(
        _batched_matmul_kernel,
        out_shape=jax.ShapeDtypeStruct((batch, K, K), jnp.float32),
        grid=(1,),
        in_specs=[
            pl.BlockSpec((batch, K, K), lambda i: (0, 0, 0)),
            pl.BlockSpec((batch, K, K), lambda i: (0, 0, 0)),
        ],
        out_specs=pl.BlockSpec((batch, K, K), lambda i: (0, 0, 0)),
        compiler_params=pltpu.CompilerParams(dimension_semantics=("arbitrary",)),
    )(U.astype(jnp.float32), VH_adj.astype(jnp.float32))


# ----------------------------------------------------------------------------
# OperatorIso (eval-mode forward)
# ----------------------------------------------------------------------------

class OperatorIsoPallas:
    def __init__(self, *, op_dim, spatial_dim=256, clustered_init=False,
                 key=jax.random.PRNGKey(42)):
        self.op_dim = op_dim
        self.spatial_dim = spatial_dim
        k_phi, k_lam = jax.random.split(key)
        # Deterministic parameter init (shapes per the PyTorch __init__).
        self.M = jnp.ones((spatial_dim,), jnp.float32)
        self.Phi = (jax.random.normal(k_phi, (spatial_dim, op_dim),
                                      dtype=jnp.float32) * 0.01)
        if not clustered_init:
            lam = jax.random.normal(k_lam, (op_dim,), dtype=jnp.float32) * (1.0 / op_dim)
            lam = jnp.cumsum(lam ** 2)
        else:
            lam = jax.random.normal(k_lam, (op_dim,), dtype=jnp.float32) ** 2
        self.Lambda = lam

    def __call__(self, A, B):
        # TODO(synk): training-mode random rank truncation (torch.randint) is
        # non-deterministic; eval-mode forward is implemented here.
        batch, S, C = A.shape
        assert S == self.spatial_dim and B.shape == A.shape
        assert self.op_dim <= S, "Operator rank must be <= spatial dim"

        # ----- _get_Omega -----
        M = self.M ** 2 + EPS                                   # (S,)
        MR = jnp.sqrt(M)
        MRI = 1.0 / MR
        o_ind = jnp.argsort(self.Lambda)                        # glue
        Lambda_sorted = self.Lambda[o_ind]                      # (K,)

        #   _project (special=False): Phi_proj = diag(1/sqrt(M)) U VH, with
        #   U,VH = svd(diag(sqrt(M)) Phi).  The K x K column permutation by
        #   o_ind is folded into VH on the host.
        X = MR[:, None] * self.Phi                              # (S, K)
        U, _, VH = jnp.linalg.svd(X, full_matrices=False)       # glue (no Pallas SVD)
        VHs = VH[:, o_ind]                                      # tiny (K,K) permute
        Phi_sorted = MRI[:, None] * jnp.dot(U, VHs)             # (S,K) — Omega return
        # Hot-path operand: W = Phi_sorted^T diag(M), (K,S), lane-dense on S.
        # Folds the 1/sqrt(M)*M scaling and avoids any in-kernel transpose or
        # (S,1) lane-1 operand.
        W = (M[:, None] * Phi_sorted).T                         # (K, S)

        # ----- _iso_solve -----
        LMask = jnp.exp(-jnp.abs(Lambda_sorted[:, None] - Lambda_sorted[None, :]))
        A2 = jnp.transpose(A, (1, 0, 2)).reshape(S, batch * C)  # batch -> N dim
        B2 = jnp.transpose(B, (1, 0, 2)).reshape(S, batch * C)
        Cmat = iso_matmul_fused(W, LMask, A2, B2, batch=batch)  # Pallas, (batch,K,K)

        Ub, _, VHb = jnp.linalg.svd(Cmat, full_matrices=False)  # glue
        # Match the PyTorch module exactly: D[-1,-1] = det(U @ VH) (raw value,
        # not jnp.sign(det)); for orthogonal U, VH this is ~ +/-1.
        sign = jnp.linalg.det(jnp.einsum('...ij,...jk->...ik', Ub, VHb))  # glue
        VHb_adj = VHb.at[:, -1, :].multiply(sign[:, None])      # fold D on host
        tauOmega = special_ortho_apply(Ub, VHb_adj)             # Pallas

        Omega = (Phi_sorted, Lambda_sorted, M)
        return tauOmega, Omega


# ----------------------------------------------------------------------------
# Main
# ----------------------------------------------------------------------------

if __name__ == "__main__":
    batch, spatial_dim, channels, op_dim = 2, 32, 4, 8

    key = jax.random.PRNGKey(0)
    kA, kB, kP = jax.random.split(key, 3)
    A = jax.random.normal(kA, (batch, spatial_dim, channels), dtype=jnp.float32)
    B = jax.random.normal(kB, (batch, spatial_dim, channels), dtype=jnp.float32)

    model = OperatorIsoPallas(op_dim=op_dim, spatial_dim=spatial_dim,
                              clustered_init=False, key=kP)

    tauOmega, (Phi_sorted, Lambda_sorted, M) = model(A, B)
    jax.block_until_ready(tauOmega)
    jax.block_until_ready(Phi_sorted)

    # --- correctness check of the fused Pallas iso-solve vs plain JAX ---
    LMask = jnp.exp(-jnp.abs(Lambda_sorted[:, None] - Lambda_sorted[None, :]))
    PhiTMB = jnp.einsum('ji,bjk->bik', Phi_sorted, M[None, :, None] * B)
    PhiTMA = jnp.einsum('ji,bjk->bik', Phi_sorted, M[None, :, None] * A)
    C_ref = LMask[None] * jnp.einsum('bij,bkj->bik', PhiTMB, PhiTMA)

    W = (M[:, None] * Phi_sorted).T
    A2 = jnp.transpose(A, (1, 0, 2)).reshape(spatial_dim, batch * channels)
    B2 = jnp.transpose(B, (1, 0, 2)).reshape(spatial_dim, batch * channels)
    C_pal = iso_matmul_fused(W, LMask, A2, B2, batch=batch)
    np.testing.assert_allclose(np.asarray(C_pal), np.asarray(C_ref),
                               rtol=1e-4, atol=1e-5)

    # --- reference special-orthogonal projection of the same C ---
    Ur, _, VHr = jnp.linalg.svd(C_pal, full_matrices=False)
    sr = jnp.linalg.det(jnp.einsum('...ij,...jk->...ik', Ur, VHr))
    VHr_adj = VHr.at[:, -1, :].multiply(sr[:, None])
    tau_ref = jnp.einsum('bij,bjk->bik', Ur, VHr_adj)
    np.testing.assert_allclose(np.asarray(tauOmega), np.asarray(tau_ref),
                               rtol=1e-4, atol=1e-4)

    # tauOmega should be (special-)orthogonal: tau @ tau^T ~= I
    eye = jnp.eye(op_dim, dtype=jnp.float32)
    err = jnp.max(jnp.abs(jnp.einsum('bij,bkj->bik', tauOmega, tauOmega) - eye))
    assert float(err) < 1e-3, f"tauOmega not orthogonal, err={float(err)}"

    print("KERNEL_OK")
</pallas_src>

<mosaic_0001>
module attributes {stable_mosaic.version = 11 : i64} {
  func.func @_iso_matmul_fused_kernel(%arg0: i32, %arg1: memref<8x32xf32, #tpu.memory_space<vmem>>, %arg2: memref<8x8xf32, #tpu.memory_space<vmem>>, %arg3: memref<32x8xf32, #tpu.memory_space<vmem>>, %arg4: memref<32x8xf32, #tpu.memory_space<vmem>>, %arg5: memref<2x8x8xf32, #tpu.memory_space<vmem>>) attributes {dimension_semantics = [#tpu.dimension_semantics<arbitrary>], iteration_bounds = array<i64: 1>, scalar_prefetch = 0 : i64, scratch_operands = 0 : i64, tpu.core_type = #tpu.core_type<tc>, window_params = [{pipeline_mode = #tpu.pipeline_mode<synchronous>, transform_indices = @transform_0, window_bounds = array<i64: 8, 32>}, {pipeline_mode = #tpu.pipeline_mode<synchronous>, transform_indices = @transform_1, window_bounds = array<i64: 8, 8>}, {pipeline_mode = #tpu.pipeline_mode<synchronous>, transform_indices = @transform_2, window_bounds = array<i64: 32, 8>}, {pipeline_mode = #tpu.pipeline_mode<synchronous>, transform_indices = @transform_3, window_bounds = array<i64: 32, 8>}, {pipeline_mode = #tpu.pipeline_mode<synchronous>, transform_indices = @transform_4, window_bounds = array<i64: 2, 8, 8>}]} {
    %c0 = arith.constant 0 : index
    %c0_0 = arith.constant 0 : index
    %0 = vector.load %arg1[%c0, %c0_0] : memref<8x32xf32, #tpu.memory_space<vmem>>, vector<8x32xf32>
    %c0_1 = arith.constant 0 : index
    %c0_2 = arith.constant 0 : index
    %1 = vector.load %arg2[%c0_1, %c0_2] : memref<8x8xf32, #tpu.memory_space<vmem>>, vector<8x8xf32>
    %c0_3 = arith.constant 0 : index
    %c0_4 = arith.constant 0 : index
    %2 = vector.load %arg3[%c0_3, %c0_4] : memref<32x8xf32, #tpu.memory_space<vmem>>, vector<32x8xf32>
    %cst = arith.constant dense<0.000000e+00> : vector<8x8xf32>
    %3 = tpu.matmul %0, %2, %cst {dimension_numbers = #tpu.dot_dimension_numbers<[1], [0], [0], [1], [0, 0, 1, 1], [], []>} : vector<8x32xf32>, vector<32x8xf32>, vector<8x8xf32> -> vector<8x8xf32>
    %c0_5 = arith.constant 0 : index
    %c0_6 = arith.constant 0 : index
    %4 = vector.load %arg4[%c0_5, %c0_6] : memref<32x8xf32, #tpu.memory_space<vmem>>, vector<32x8xf32>
    %cst_7 = arith.constant dense<0.000000e+00> : vector<8x8xf32>
    %5 = tpu.matmul %0, %4, %cst_7 {dimension_numbers = #tpu.dot_dimension_numbers<[1], [0], [0], [1], [0, 0, 1, 1], [], []>} : vector<8x32xf32>, vector<32x8xf32>, vector<8x8xf32> -> vector<8x8xf32>
    %6 = vector.extract_strided_slice %5 {offsets = [0, 0], sizes = [8, 4], strides = [1, 1]} : vector<8x8xf32> to vector<8x4xf32>
    %7 = vector.extract_strided_slice %3 {offsets = [0, 0], sizes = [8, 4], strides = [1, 1]} : vector<8x8xf32> to vector<8x4xf32>
    %cst_8 = arith.constant dense<0.000000e+00> : vector<8x8xf32>
    %8 = tpu.matmul %6, %7, %cst_8 {dimension_numbers = #tpu.dot_dimension_numbers<[1], [1], [0], [0], [0, 0, 1, 0], [], []>} : vector<8x4xf32>, vector<8x4xf32>, vector<8x8xf32> -> vector<8x8xf32>
    %9 = arith.mulf %1, %8 : vector<8x8xf32>
    %c0_9 = arith.constant 0 : index
    %c0_10 = arith.constant 0 : index
    %c0_11 = arith.constant 0 : index
    %10 = vector.load %arg5[%c0_9, %c0_10, %c0_11] : memref<2x8x8xf32, #tpu.memory_space<vmem>>, vector<1x8x8xf32>
    %11 = vector.shape_cast %10 : vector<1x8x8xf32> to vector<8x8xf32>
    %12 = vector.shape_cast %9 : vector<8x8xf32> to vector<1x8x8xf32>
    tpu.vector_store %arg5[%c0_9, %c0_10, %c0_11], %12 {strides = array<i32>} : memref<2x8x8xf32, #tpu.memory_space<vmem>>, vector<1x8x8xf32>,
    %13 = vector.extract_strided_slice %5 {offsets = [0, 4], sizes = [8, 4], strides = [1, 1]} : vector<8x8xf32> to vector<8x4xf32>
    %14 = vector.extract_strided_slice %3 {offsets = [0, 4], sizes = [8, 4], strides = [1, 1]} : vector<8x8xf32> to vector<8x4xf32>
    %cst_12 = arith.constant dense<0.000000e+00> : vector<8x8xf32>
    %15 = tpu.matmul %13, %14, %cst_12 {dimension_numbers = #tpu.dot_dimension_numbers<[1], [1], [0], [0], [0, 0, 1, 0], [], []>} : vector<8x4xf32>, vector<8x4xf32>, vector<8x8xf32> -> vector<8x8xf32>
    %16 = arith.mulf %1, %15 : vector<8x8xf32>
    %c1 = arith.constant 1 : index
    %c0_13 = arith.constant 0 : index
    %c0_14 = arith.constant 0 : index
    %17 = vector.load %arg5[%c1, %c0_13, %c0_14] : memref<2x8x8xf32, #tpu.memory_space<vmem>>, vector<1x8x8xf32>
    %18 = vector.shape_cast %17 : vector<1x8x8xf32> to vector<8x8xf32>
    %19 = vector.shape_cast %16 : vector<8x8xf32> to vector<1x8x8xf32>
    tpu.vector_store %arg5[%c1, %c0_13, %c0_14], %19 {strides = array<i32>} : memref<2x8x8xf32, #tpu.memory_space<vmem>>, vector<1x8x8xf32>,
    return
  }
  func.func @transform_0(%arg0: i32) -> (i32, i32) {
    %c0_i32 = arith.constant 0 : i32
    %c0_i32_0 = arith.constant 0 : i32
    %c0_i32_1 = arith.constant 0 : i32
    return %c0_i32, %c0_i32_0 : i32, i32
  }
  func.func @transform_1(%arg0: i32) -> (i32, i32) {
    %c0_i32 = arith.constant 0 : i32
    %c0_i32_0 = arith.constant 0 : i32
    %c0_i32_1 = arith.constant 0 : i32
    return %c0_i32, %c0_i32_0 : i32, i32
  }
  func.func @transform_2(%arg0: i32) -> (i32, i32) {
    %c0_i32 = arith.constant 0 : i32
    %c0_i32_0 = arith.constant 0 : i32
    %c0_i32_1 = arith.constant 0 : i32
    return %c0_i32, %c0_i32_0 : i32, i32
  }
  func.func @transform_3(%arg0: i32) -> (i32, i32) {
    %c0_i32 = arith.constant 0 : i32
    %c0_i32_0 = arith.constant 0 : i32
    %c0_i32_1 = arith.constant 0 : i32
    return %c0_i32, %c0_i32_0 : i32, i32
  }
  func.func @transform_4(%arg0: i32) -> (i32, i32, i32) {
    %c0_i32 = arith.constant 0 : i32
    %c0_i32_0 = arith.constant 0 : i32
    %c0_i32_1 = arith.constant 0 : i32
    %c0_i32_2 = arith.constant 0 : i32
    return %c0_i32, %c0_i32_0, %c0_i32_1 : i32, i32, i32
  }
}

</mosaic_0001>

<llo_original>
// kernel: tpu_custom_call.1
$region0: #{tpu_custom_call.1}
  #allocation0 [shape = 'u32[]', space=smem, size = 0x4, offset = 0x4, fixed_abs, tag = 'smem constant byte address 0x4 - core index']
  #allocation1 [shape = 'u32[72,128]{1,0:T(1,128)}', space=vmem, size = 0x9000, scoped, tag = 'internal scratch']
  %s0 = inlined_call_operand.vmem [shape: f32[8,32], index: 0, kind: input, shape index: {}]
  %s1 = inlined_call_operand.vmem [shape: f32[8,8], index: 1, kind: input, shape index: {}]
  %s2 = inlined_call_operand.vmem [shape: f32[32,8], index: 2, kind: input, shape index: {}]
  %s3 = inlined_call_operand.vmem [shape: f32[32,8], index: 3, kind: input, shape index: {}]
  %s4 = inlined_call_operand.hbm [shape: f32[2,8,8], index: 4, kind: output, shape index: {}]
  %s5 = sld [smem:[#allocation0]]
  $region26: #{tpu_custom_call.1} parent=0
    _
  %s7 = ssub.s32 1, %s5
  %s8 = scalar_select 0, %s7, %s5
  $region1: #{tpu_custom_call.1} parent=0
    #allocation2 [shape = 'u8[8192]{0}', space=vmem, size = 0x2000, scoped, tag = 'output window, operand 0, single buffered']
    #allocation3 [shape = 's32[1]{0}', space=sflag, size = 0x4, scoped, tag = 'scoped memory for tpu_custom_call.1']
    %9 = vsyncpa [#allocation3], 0
    // Predicated region
    $region2: #{tpu_custom_call.1} parent=1 // pred_check
      _
    $region3: #{tpu_custom_call.1} parent=1 // pred_check_branch
      %11 = sbr.rel (0) target = $region5
    $region4: #{tpu_custom_call.1} parent=1 // pred_region
      _
    $region5: #{tpu_custom_call.1} parent=1 // pred_fallthru
      _
    // Predicated region
    $region6: #{tpu_custom_call.1} parent=1 // pred_check
      _
    $region7: #{tpu_custom_call.1} parent=1 // pred_check_branch
      %13 = sbr.rel (0) target = $region9
    $region8: #{tpu_custom_call.1} parent=1 // pred_region
      _
    $region9: #{tpu_custom_call.1} parent=1 // pred_fallthru
      _
    // Predicated region
    $region10: #{tpu_custom_call.1} parent=1 // pred_check
      _
    $region11: #{tpu_custom_call.1} parent=1 // pred_check_branch
      %15 = sbr.rel (0) target = $region13
    $region12: #{tpu_custom_call.1} parent=1 // pred_region
      _
    $region13: #{tpu_custom_call.1} parent=1 // pred_fallthru
      _
    // Predicated region
    $region14: #{tpu_custom_call.1} parent=1 // pred_check
      _
    $region15: #{tpu_custom_call.1} parent=1 // pred_check_branch
      %17 = sbr.rel (0) target = $region17
    $region16: #{tpu_custom_call.1} parent=1 // pred_region
      _
    $region17: #{tpu_custom_call.1} parent=1 // pred_fallthru
      _
    %v18 = vld [vmem:[%s0] sm:$0xff]
    %v19 = vld [vmem:[%s1] sm:$0xff]
    %v20 = vld [vmem:[%s2] sm:$0xff]
    %v21 = vld [vmem:[%s2 + $0x8] sm:$0xff]
    %v22 = vld [vmem:[%s2 + $0x10] sm:$0xff]
    %v23 = vld [vmem:[%s2 + $0x18] sm:$0xff]
    %vm24 = vcmask 261120
    %v26 = vsel %vm24, %v18, 0
    %28 = vmatpush.msra.mxu0 0.0
    %29 = vmatpush.msra.mxu0 0.0
    %30 = vmatpush.msra.mxu0 0.0
    %31 = vmatpush.msra.mxu0 0.0
    %32 = vmatpush.msra.mxu0 0.0
    %33 = vmatpush.msra.mxu0 0.0
    %34 = vmatpush.msra.mxu0 0.0
    %35 = vmatpush.msra.mxu0 0.0
    %36 = vmatpush.msra.mxu0 0.0
    %37 = vmatpush.msra.mxu0 0.0
    %38 = vmatpush.msra.mxu0 0.0
    %39 = vmatpush.msra.mxu0 0.0
    %40 = vmatpush.msra.mxu0 %v23
    %41 = vmatpush.msra.mxu0 %v22
    %42 = vmatpush.msra.mxu0 %v21
    %43 = vmatpush.msra.mxu0 %v20
    %44 = vmatmul.f32.gmra.mxu0 %v26
    %v45 = vpop.f32.mrf.mxu0
    %v46 = vadd.f32 0.0, %v45
    %47 = vdwg.mxu0
    %v48 = vld [vmem:[%s3] sm:$0xff]
    %v49 = vld [vmem:[%s3 + $0x8] sm:$0xff]
    %v50 = vld [vmem:[%s3 + $0x10] sm:$0xff]
    %v51 = vld [vmem:[%s3 + $0x18] sm:$0xff]
    %52 = vmatpush.msra.mxu0 0.0
    %53 = vmatpush.msra.mxu0 0.0
    %54 = vmatpush.msra.mxu0 0.0
    %55 = vmatpush.msra.mxu0 0.0
    %56 = vmatpush.msra.mxu0 0.0
    %57 = vmatpush.msra.mxu0 0.0
    %58 = vmatpush.msra.mxu0 0.0
    %59 = vmatpush.msra.mxu0 0.0
    %60 = vmatpush.msra.mxu0 0.0
    %61 = vmatpush.msra.mxu0 0.0
    %62 = vmatpush.msra.mxu0 0.0
    %63 = vmatpush.msra.mxu0 0.0
    %64 = vmatpush.msra.mxu0 %v51
    %65 = vmatpush.msra.mxu0 %v50
    %66 = vmatpush.msra.mxu0 %v49
    %67 = vmatpush.msra.mxu0 %v48
    %68 = vmatmul.f32.gmra.mxu0 %v26
    %v69 = vpop.f32.mrf.mxu0
    %v70 = vadd.f32 0.0, %v69
    %71 = vdwg.mxu0
    %vm72 = vcmask 31744
    %v74 = vsel %vm72, %v70, 0
    %v77 = vsel %vm72, %v46, 0
    %79 = vmatpush.xpose.msra.mxu0 0.0
    %80 = vmatpush.xpose.msra.mxu0 0.0
    %81 = vmatpush.xpose.msra.mxu0 0.0
    %82 = vmatpush.xpose.msra.mxu0 0.0
    %83 = vmatpush.xpose.msra.mxu0 0.0
    %84 = vmatpush.xpose.msra.mxu0 0.0
    %85 = vmatpush.xpose.msra.mxu0 0.0
    %86 = vmatpush.xpose.msra.mxu0 0.0
    %87 = vmatpush.xpose.msra.mxu0 0.0
    %88 = vmatpush.xpose.msra.mxu0 0.0
    %89 = vmatpush.xpose.msra.mxu0 0.0
    %90 = vmatpush.xpose.msra.mxu0 0.0
    %91 = vmatpush.xpose.msra.mxu0 0.0
    %92 = vmatpush.xpose.msra.mxu0 0.0
    %93 = vmatpush.xpose.msra.mxu0 0.0
    %94 = vmatpush.xpose.msra.mxu0 %v77
    %95 = vmatmul.f32.gmra.mxu0 %v74
    %v96 = vpop.f32.mrf.mxu0
    %v97 = vadd.f32 0.0, %v96
    %98 = vdwg.mxu0
    %v99 = vmul.f32 %v19, %v97
    %vm100 = vcmask 64512
    %101 = vst.msk [vmem:[#allocation2] sm:$0xff] %vm100, %v99
    %102 = vrot.lane.b32.xlu0 %v70, 124
    %v103 = vpop.permute.xlu0 %102
    %104 = vrot.lane.b32.xlu0 %v46, 124
    %v105 = vpop.permute.xlu0 %104
    %v106 = vsel %vm72, %v103, 0
    %v108 = vsel %vm72, %v105, 0
    %110 = vmatpush.xpose.msra.mxu0 0.0
    %111 = vmatpush.xpose.msra.mxu0 0.0
    %112 = vmatpush.xpose.msra.mxu0 0.0
    %113 = vmatpush.xpose.msra.mxu0 0.0
    %114 = vmatpush.xpose.msra.mxu0 0.0
    %115 = vmatpush.xpose.msra.mxu0 0.0
    %116 = vmatpush.xpose.msra.mxu0 0.0
    %117 = vmatpush.xpose.msra.mxu0 0.0
    %118 = vmatpush.xpose.msra.mxu0 0.0
    %119 = vmatpush.xpose.msra.mxu0 0.0
    %120 = vmatpush.xpose.msra.mxu0 0.0
    %121 = vmatpush.xpose.msra.mxu0 0.0
    %122 = vmatpush.xpose.msra.mxu0 0.0
    %123 = vmatpush.xpose.msra.mxu0 0.0
    %124 = vmatpush.xpose.msra.mxu0 0.0
    %125 = vmatpush.xpose.msra.mxu0 %v108
    %126 = vmatmul.f32.gmra.mxu0 %v106
    %v127 = vpop.f32.mrf.mxu0
    %v128 = vadd.f32 0.0, %v127
    %129 = vdwg.mxu0
    %v130 = vmul.f32 %v19, %v128
    %s131 = scalar_lea.vmem [#allocation2], 8
    %132 = vst.msk [vmem:[%s131] sm:$0xff] %vm100, %v130
    // Predicated region
    $region18: #{tpu_custom_call.1} parent=1 // pred_check
      _
    $region19: #{tpu_custom_call.1} parent=1 // pred_check_branch
      %134 = sbr.rel (0) target = $region21
    $region20: #{tpu_custom_call.1} parent=1 // pred_region
      %136 = vsyncadd [#allocation3], 0
      %s137 = sshll.u32 [#allocation2], 4
      %s138 = int_to_ptr.vmem [resolvable:$true] %s137
      %s139 = sshll.u32 %s4, 4
      %s140 = int_to_ptr.hbm [resolvable:$true] %s139
      %145 = dma.vmem_to_hbm [thread:$0]  %s138, 256, %s140, [#allocation3], 128, 128, 8
    $region21: #{tpu_custom_call.1} parent=1 // pred_fallthru
      _
    // Predicated region
    $region22: #{tpu_custom_call.1} parent=1 // pred_check
      _
    $region23: #{tpu_custom_call.1} parent=1 // pred_check_branch
      %147 = sbr.rel (0) target = $region25
    $region24: #{tpu_custom_call.1} parent=1 // pred_region
      %149 = dma.done [#allocation3], 256
    $region25: #{tpu_custom_call.1} parent=1 // pred_fallthru
      _
    %150 = vsyncpa [#allocation3], 1

</llo_original>
